<compile_context>
chip_gen: v6e
topology: v6e:2x2x1
jax: 0.10.0
libtpu: 0.0.40
codegen_flags: <defaults>
</compile_context>

<pallas_src>
import jax
import jax.numpy as jnp
from jax import lax
from jax.experimental import pallas as pl
from jax.experimental.pallas import tpu as pltpu


def _round_up(x, m):
    return (x + m - 1) // m * m


def _cdiv(a, b):
    return -(-a // b)


def _pick_tile(dim, cap, granule):
    """Largest tile <= cap (granule-aligned) that minimizes padding waste."""
    dim_r = _round_up(max(dim, granule), granule)
    if dim_r <= cap:
        return dim_r
    nblk = _cdiv(dim_r, cap)
    return _round_up(_cdiv(dim_r, nblk), granule)


def _tpu_generation():
    try:
        kind = jax.devices()[0].device_kind.lower()
    except Exception:
        return 0
    for tag, gen in (("v7", 7), ("7x", 7), ("v6", 6), ("v5", 5),
                     ("v4", 4), ("v3", 3), ("v2", 2)):
        if tag in kind:
            return gen
    return 0


def _auto_compute_dtype(x_dtype):
    gen = _tpu_generation()
    if gen in (6, 7):
        return jnp.bfloat16     # full-rate MXU + half the HBM bytes for x, W
    return x_dtype              # v5e etc.: keep f32 (no bf16 VPU; smaller win)


# ----------------------------- kernels --------------------------------------


def _lasso_tiled_kernel(pen_ref, x_ref, w_ref, b_ref, l1_ref, out_ref,
                        acc_ref, l1_acc_ref):
    i = pl.program_id(0)
    k = pl.program_id(2)
    nk = pl.num_programs(2)

    @pl.when(k == 0)
    def _():
        acc_ref[...] = jnp.zeros_like(acc_ref)

    # x @ W.T without materializing W.T: contract dim 1 of both operands so
    # W stays in its native nn.Linear [out, in] layout for the MXU.
    acc_ref[...] += lax.dot_general(
        x_ref[...], w_ref[...],
        dimension_numbers=(((1,), (1,)), ((), ())),
        preferred_element_type=jnp.float32)

    # Fused L1 over |W|: only the first batch tile does it (every batch tile
    # sees identical W blocks).  Per-k work is elementwise-only (VPU) into an
    # f32 scratch; the single cross-lane reduce + lane-dense broadcast store
    # is deferred to the last k step.
    @pl.when(i == 0)
    def _():
        @pl.when(k == 0)
        def _():
            l1_acc_ref[...] = jnp.zeros_like(l1_acc_ref)

        l1_acc_ref[...] += jnp.abs(w_ref[...]).astype(jnp.float32)

        @pl.when(k == nk - 1)
        def _():
            l1_ref[...] = (jnp.zeros_like(l1_ref)
                           + pen_ref[0, 0] * jnp.sum(l1_acc_ref[...]))

    @pl.when(k == nk - 1)
    def _():
        out_ref[...] = (acc_ref[...] + b_ref[...]).astype(out_ref.dtype)


def _lasso_single_kernel(pen_ref, x_ref, w_ref, b_ref, l1_ref, out_ref):
    # Tiny-shape fast path: whole (padded) problem in one block, no K loop.
    w = w_ref[...]
    out = lax.dot_general(
        x_ref[...], w,
        dimension_numbers=(((1,), (1,)), ((), ())),
        preferred_element_type=jnp.float32)
    out_ref[...] = (out + b_ref[...]).astype(out_ref.dtype)
    l1_ref[...] = (jnp.zeros_like(l1_ref)
                   + pen_ref[0, 0] * jnp.sum(jnp.abs(w).astype(jnp.float32)))


# ----------------------------- wrapper ---------------------------------------


def lasso_regression_forward(x, weight, bias, l1_penalty, *,
                             tm=None, tn=None, tk=None, compute_dtype=None):
    """Returns (l1_loss, out) matching the PyTorch LassoRegression module."""
    batch, input_size = x.shape
    output_size, w_in = weight.shape
    assert w_in == input_size
    out_dtype = x.dtype

    gen = _tpu_generation()
    vmem_cap = (96 if gen in (5, 6) else 48) * 1024 * 1024  # v7x: 64 MiB/TC

    pen = jnp.asarray(l1_penalty, jnp.float32).reshape(1, 1)

    # ---------- tiny-shape fast path: single block, no grid/scratch ----------
    if tm is None and tn is None and tk is None:
        mp = _round_up(batch, 8)
        kp = _round_up(input_size, 128)
        np_ = _round_up(output_size, 128)
        approx_bytes = (mp * kp + np_ * kp + mp * np_) * 4
        if approx_bytes <= 4 * 1024 * 1024:
            x_p = jnp.zeros((mp, kp), x.dtype).at[:batch, :input_size].set(x)
            w_p = (jnp.zeros((np_, kp), weight.dtype)
                   .at[:output_size, :input_size].set(weight))
            b_p = (jnp.zeros((1, np_), jnp.float32)
                   .at[0, :output_size].set(bias.astype(jnp.float32)))
            l1_blk, out_p = pl.pallas_call(
                _lasso_single_kernel,
                out_shape=(jax.ShapeDtypeStruct((8, 128), jnp.float32),
                           jax.ShapeDtypeStruct((mp, np_), out_dtype)),
                in_specs=[
                    pl.BlockSpec(memory_space=pltpu.MemorySpace.SMEM),
                    pl.BlockSpec(memory_space=pltpu.MemorySpace.VMEM),
                    pl.BlockSpec(memory_space=pltpu.MemorySpace.VMEM),
                    pl.BlockSpec(memory_space=pltpu.MemorySpace.VMEM),
                ],
                out_specs=(pl.BlockSpec(memory_space=pltpu.MemorySpace.VMEM),
                           pl.BlockSpec(memory_space=pltpu.MemorySpace.VMEM)),
                compiler_params=pltpu.CompilerParams(
                    vmem_limit_bytes=32 * 1024 * 1024),
            )(pen, x_p, w_p, b_p)
            return l1_blk[0, 0], out_p[:batch, :output_size]

    # ------------------------------ tiled path --------------------------------
    if compute_dtype is None:
        compute_dtype = _auto_compute_dtype(x.dtype)
    compute_dtype = jnp.dtype(compute_dtype)
    m_granule = 16 if compute_dtype == jnp.bfloat16 else 8

    tm = tm if tm is not None else _pick_tile(batch, 512, m_granule)
    mp = _round_up(batch, tm)
    gm = mp // tm

    tn_cap = 512
    if gen == 7 and gm == 1:
        # Keep >= 2 blocks on a parallel axis so both v7x TensorCores get work.
        half = _round_up(output_size, 128) // 2
        if half >= 128:
            tn_cap = min(tn_cap, _round_up(half, 128))
    tn = tn if tn is not None else _pick_tile(output_size, tn_cap, 128)
    np_ = _round_up(output_size, tn)
    gn = np_ // tn

    tk = tk if tk is not None else _pick_tile(input_size, 2048, 128)
    kp = _round_up(input_size, tk)
    gk = kp // tk

    # Zero padding keeps both the matmul and the |W| sum exact; padded output
    # rows/cols are sliced off below.  Casting here (wrapper-side) also halves
    # the HBM DMA bytes for x and W on the bf16 path.
    x_p = (jnp.zeros((mp, kp), compute_dtype)
           .at[:batch, :input_size].set(x.astype(compute_dtype)))
    w_p = (jnp.zeros((np_, kp), compute_dtype)
           .at[:output_size, :input_size].set(weight.astype(compute_dtype)))
    b_p = (jnp.zeros((1, np_), jnp.float32)
           .at[0, :output_size].set(bias.astype(jnp.float32)))

    grid_spec = pltpu.PrefetchScalarGridSpec(
        num_scalar_prefetch=0,
        grid=(gm, gn, gk),
        in_specs=[
            pl.BlockSpec((1, 1), lambda i, j, k: (0, 0),
                         memory_space=pltpu.MemorySpace.SMEM),   # l1_penalty
            pl.BlockSpec((tm, tk), lambda i, j, k: (i, k)),      # x tile
            pl.BlockSpec((tn, tk), lambda i, j, k: (j, k)),      # W tile
            pl.BlockSpec((1, tn), lambda i, j, k: (0, j)),       # bias tile
        ],
        out_specs=(
            pl.BlockSpec((8, 128), lambda i, j, k: (i, j)),      # L1 partials
            pl.BlockSpec((tm, tn), lambda i, j, k: (i, j)),      # linear out
        ),
        scratch_shapes=[
            pltpu.VMEM((tm, tn), jnp.float32),   # matmul accumulator
            pltpu.VMEM((tn, tk), jnp.float32),   # elementwise |W| accumulator
        ],
    )

    # TODO(synk): if profiling shows exposed DMA on the K loop for small tk,
    # add pipeline_mode=pl.Buffered(3) to the W BlockSpec.
    l1_parts, out_p = pl.pallas_call(
        _lasso_tiled_kernel,
        grid_spec=grid_spec,
        out_shape=(
            jax.ShapeDtypeStruct((gm * 8, gn * 128), jnp.float32),
            jax.ShapeDtypeStruct((mp, np_), out_dtype),
        ),
        compiler_params=pltpu.CompilerParams(
            dimension_semantics=("parallel", "parallel", "arbitrary"),
            vmem_limit_bytes=vmem_cap,
        ),
    )(pen, x_p, w_p, b_p)

    # Only the i == 0 row of L1 blocks is ever written; one lane per j block
    # holds penalty * sum(|W[j-th row tile, :]|) broadcast over its 8x128 tile.
    l1_loss = jnp.sum(l1_parts[0, ::128])
    out = out_p[:batch, :output_size]
    return l1_loss, out


if __name__ == "__main__":
    key = jax.random.PRNGKey(0)
    kx, kw, kb, kx2, kw2, kb2 = jax.random.split(key, 6)

    # ---- tiny-shape test (single-block fast path), matches the module spec ----
    batch, input_size, output_size = 8, 32, 16
    l1_penalty = 0.01
    x = jax.random.normal(kx, (batch, input_size), dtype=jnp.float32)
    weight = jax.random.normal(kw, (output_size, input_size), dtype=jnp.float32) * 0.1
    bias = jax.random.normal(kb, (output_size,), dtype=jnp.float32) * 0.1

    l1_loss, out = lasso_regression_forward(x, weight, bias, l1_penalty)
    jax.block_until_ready((l1_loss, out))

    ref_out = jnp.matmul(x, weight.T, precision=lax.Precision.HIGHEST) + bias
    ref_l1 = jnp.float32(l1_penalty) * jnp.sum(jnp.abs(weight))
    assert out.shape == (batch, output_size)
    assert jnp.allclose(out, ref_out, atol=1e-5, rtol=1e-5), "linear output mismatch"
    assert jnp.allclose(l1_loss, ref_l1, atol=1e-6, rtol=1e-5), "l1 loss mismatch"

    # ---- multi-tile test (forced small tiles -> grid (2,2,2), K reduction) ----
    batch2, in2, out2 = 96, 256, 192
    x2 = jax.random.normal(kx2, (batch2, in2), dtype=jnp.float32)
    w2 = jax.random.normal(kw2, (out2, in2), dtype=jnp.float32) * 0.05
    b2 = jax.random.normal(kb2, (out2,), dtype=jnp.float32) * 0.1
    pen2 = 0.003

    cd = jnp.dtype(_auto_compute_dtype(jnp.dtype(jnp.float32)))
    l1_2, o2 = lasso_regression_forward(x2, w2, b2, pen2,
                                        tm=64, tn=128, tk=128, compute_dtype=cd)
    jax.block_until_ready((l1_2, o2))

    ref_o2 = jnp.matmul(x2, w2.T, precision=lax.Precision.HIGHEST) + b2
    ref_l1_2 = jnp.float32(pen2) * jnp.sum(jnp.abs(w2))
    if cd == jnp.bfloat16:
        atol_o, rtol_o, rtol_l = 5e-2, 5e-2, 2e-2
    else:
        atol_o, rtol_o, rtol_l = 2e-3, 2e-3, 1e-4
    assert o2.shape == (batch2, out2)
    assert jnp.allclose(o2, ref_o2, atol=atol_o, rtol=rtol_o), "tiled output mismatch"
    assert jnp.allclose(l1_2, ref_l1_2, atol=1e-3, rtol=rtol_l), "tiled l1 mismatch"

    print("KERNEL_OK")
</pallas_src>

<mosaic_0001>
module attributes {stable_mosaic.version = 11 : i64} {
  func.func @_lasso_single_kernel(%arg0: memref<1x1xf32, #tpu.memory_space<smem>>, %arg1: memref<8x128xf32, #tpu.memory_space<vmem>>, %arg2: memref<128x128xf32, #tpu.memory_space<vmem>>, %arg3: memref<1x128xf32, #tpu.memory_space<vmem>>, %arg4: memref<8x128xf32, #tpu.memory_space<vmem>>, %arg5: memref<8x128xf32, #tpu.memory_space<vmem>>) attributes {dimension_semantics = [], scalar_prefetch = 0 : i64, scratch_operands = 0 : i64, tpu.core_type = #tpu.core_type<tc>} {
    %c0 = arith.constant 0 : index
    %c0_0 = arith.constant 0 : index
    %0 = vector.load %arg2[%c0, %c0_0] : memref<128x128xf32, #tpu.memory_space<vmem>>, vector<128x128xf32>
    %c0_1 = arith.constant 0 : index
    %c0_2 = arith.constant 0 : index
    %1 = vector.load %arg1[%c0_1, %c0_2] : memref<8x128xf32, #tpu.memory_space<vmem>>, vector<8x128xf32>
    %cst = arith.constant dense<0.000000e+00> : vector<8x128xf32>
    %2 = tpu.matmul %1, %0, %cst {dimension_numbers = #tpu.dot_dimension_numbers<[1], [1], [0], [0], [0, 0, 1, 0], [], []>} : vector<8x128xf32>, vector<128x128xf32>, vector<8x128xf32> -> vector<8x128xf32>
    %c0_3 = arith.constant 0 : index
    %c0_4 = arith.constant 0 : index
    %3 = vector.load %arg3[%c0_3, %c0_4] : memref<1x128xf32, #tpu.memory_space<vmem>>, vector<1x128xf32>
    %4 = vector.broadcast %3 : vector<1x128xf32> to vector<8x128xf32>
    %5 = arith.addf %2, %4 : vector<8x128xf32>
    %c0_5 = arith.constant 0 : index
    %c0_6 = arith.constant 0 : index
    %6 = vector.load %arg5[%c0_5, %c0_6] : memref<8x128xf32, #tpu.memory_space<vmem>>, vector<8x128xf32>
    tpu.vector_store %arg5[%c0_5, %c0_6], %5 {strides = array<i32>} : memref<8x128xf32, #tpu.memory_space<vmem>>, vector<8x128xf32>,
    %cst_7 = arith.constant 0.000000e+00 : f32
    %7 = vector.broadcast %cst_7 : f32 to vector<8x128xf32>
    %c0_8 = arith.constant 0 : index
    %c0_9 = arith.constant 0 : index
    %8 = memref.load %arg0[%c0_8, %c0_9] : memref<1x1xf32, #tpu.memory_space<smem>>
    %9 = math.absf %0 : vector<128x128xf32>
    %10 = vector.shape_cast %9 : vector<128x128xf32> to vector<1x128x128xf32>
    %cst_10 = arith.constant dense<0.000000e+00> : vector<1xf32>
    %11 = vector.multi_reduction <add>, %10, %cst_10 [1, 2] : vector<1x128x128xf32> to vector<1xf32>
    %12 = vector.shape_cast %11 : vector<1xf32> to vector<1x1x1xf32>
    %13 = vector.extract %12[0, 0, 0] : f32 from vector<1x1x1xf32>
    %14 = arith.mulf %8, %13 : f32
    %15 = vector.broadcast %14 : f32 to vector<8x128xf32>
    %16 = arith.addf %7, %15 : vector<8x128xf32>
    %c0_11 = arith.constant 0 : index
    %c0_12 = arith.constant 0 : index
    %17 = vector.load %arg4[%c0_11, %c0_12] : memref<8x128xf32, #tpu.memory_space<vmem>>, vector<8x128xf32>
    tpu.vector_store %arg4[%c0_11, %c0_12], %16 {strides = array<i32>} : memref<8x128xf32, #tpu.memory_space<vmem>>, vector<8x128xf32>,
    return
  }
}

</mosaic_0001>

<llo_original>
// kernel: tpu_custom_call.1
$region0: #{tpu_custom_call.1}
  #allocation0 [shape = 'u32[]', space=smem, size = 0x4, offset = 0x4, fixed_abs, tag = 'smem constant byte address 0x4 - core index']
  #allocation1 [shape = 'u32[144,128]{1,0:T(1,128)}', space=vmem, size = 0x12000, scoped, tag = 'internal scratch']
  #allocation2 [shape = 'f32[1,1]{1,0:T(1,128)S(6)}', space=smem, size = 0x200, scoped, tag = 'scoped memory for tpu_custom_call.1']
  %s0 = inlined_call_operand.<no memory space> [shape: f32[1,1], index: 0, kind: input, shape index: {}]
  %s1 = inlined_call_operand.hbm [shape: f32[8,128], index: 1, kind: input, shape index: {}]
  %s2 = inlined_call_operand.hbm [shape: f32[128,128], index: 2, kind: input, shape index: {}]
  %s3 = inlined_call_operand.vmem [shape: f32[1,128], index: 3, kind: input, shape index: {}]
  %s4 = inlined_call_operand.hbm [shape: f32[8,128], index: 4, kind: output, shape index: {0}]
  %s5 = inlined_call_operand.hbm [shape: f32[8,128], index: 5, kind: output, shape index: {1}]
  %6 = xla_tuple %s4, %s5
  %s7 = sld [smem:[#allocation0]]
  $region42: #{tpu_custom_call.1} parent=0
    _
  %s9 = ssub.s32 1, %s7
  %s10 = scalar_select 0, %s9, %s7
  %11 = sst [smem:[#allocation2]] %s0
  $region1: #{tpu_custom_call.1} parent=0
    #allocation3 [shape = 'u8[4096]{0}', space=vmem, size = 0x1000, scoped, tag = 'input window, operand 1, single buffered']
    #allocation4 [shape = 's32[1]{0}', space=sflag, size = 0x4, scoped, tag = 'scoped memory for tpu_custom_call.1']
    #allocation5 [shape = 's32[1]{0}', space=sflag, size = 0x4, scoped, tag = 'scoped memory for tpu_custom_call.1']
    #allocation6 [shape = 'u8[65536]{0}', space=vmem, size = 0x10000, scoped, tag = 'input window, operand 2, single buffered']
    #allocation7 [shape = 's32[1]{0}', space=sflag, size = 0x4, scoped, tag = 'scoped memory for tpu_custom_call.1']
    #allocation8 [shape = 'u8[4096]{0}', space=vmem, size = 0x1000, scoped, tag = 'output window, operand 0, single buffered']
    #allocation9 [shape = 'u8[4096]{0}', space=vmem, size = 0x1000, scoped, tag = 'output window, operand 1, single buffered']
    #allocation10 [shape = 's32[1]{0}', space=sflag, size = 0x4, scoped, tag = 'scoped memory for tpu_custom_call.1']
    %12 = vsyncpa [#allocation4], 0
    %13 = vsyncpa [#allocation7], 0
    %14 = vsyncpa [#allocation5], 0
    %15 = vsyncpa [#allocation10], 0
    // Predicated region
    $region2: #{tpu_custom_call.1} parent=1 // pred_check
      _
    $region3: #{tpu_custom_call.1} parent=1 // pred_check_branch
      %17 = sbr.rel (0) target = $region5
    $region4: #{tpu_custom_call.1} parent=1 // pred_region
      _
    $region5: #{tpu_custom_call.1} parent=1 // pred_fallthru
      _
    // Predicated region
    $region6: #{tpu_custom_call.1} parent=1 // pred_check
      _
    $region7: #{tpu_custom_call.1} parent=1 // pred_check_branch
      %19 = sbr.rel (0) target = $region9
    $region8: #{tpu_custom_call.1} parent=1 // pred_region
      %s21 = ssub.s32 128, 128
      %22 = vsyncadd [#allocation4], %s21
      %s24 = sshll.u32 [#allocation3], 4
      %s25 = int_to_ptr.vmem [resolvable:$true] %s24
      %27 = dma.hbm_to_vmem [thread:$0]  %s1, 128, %s25, [#allocation4]
    $region9: #{tpu_custom_call.1} parent=1 // pred_fallthru
      _
    // Predicated region
    $region10: #{tpu_custom_call.1} parent=1 // pred_check
      _
    $region11: #{tpu_custom_call.1} parent=1 // pred_check_branch
      %29 = sbr.rel (0) target = $region13
    $region12: #{tpu_custom_call.1} parent=1 // pred_region
      %s31 = ssub.s32 2048, 2048
      %32 = vsyncadd [#allocation7], %s31
      %s33 = sshll.u32 [#allocation6], 4
      %s34 = int_to_ptr.vmem [resolvable:$true] %s33
      %39 = dma.hbm_to_vmem [thread:$0]  %s2, 2048, %s34, [#allocation7], 128, 128, 8
    $region13: #{tpu_custom_call.1} parent=1 // pred_fallthru
      _
    // Predicated region
    $region14: #{tpu_custom_call.1} parent=1 // pred_check
      _
    $region15: #{tpu_custom_call.1} parent=1 // pred_check_branch
      %41 = sbr.rel (0) target = $region17
    $region16: #{tpu_custom_call.1} parent=1 // pred_region
      _
    $region17: #{tpu_custom_call.1} parent=1 // pred_fallthru
      _
    // Predicated region
    $region18: #{tpu_custom_call.1} parent=1 // pred_check
      _
    $region19: #{tpu_custom_call.1} parent=1 // pred_check_branch
      %43 = sbr.rel (0) target = $region21
    $region20: #{tpu_custom_call.1} parent=1 // pred_region
      %44 = dma.done [#allocation4], 128
    $region21: #{tpu_custom_call.1} parent=1 // pred_fallthru
      _
    // Predicated region
    $region22: #{tpu_custom_call.1} parent=1 // pred_check
      _
    $region23: #{tpu_custom_call.1} parent=1 // pred_check_branch
      %46 = sbr.rel (0) target = $region25
    $region24: #{tpu_custom_call.1} parent=1 // pred_region
      %47 = dma.done [#allocation7], 2048
    $region25: #{tpu_custom_call.1} parent=1 // pred_fallthru
      _
    %v48 = vld [vmem:[#allocation6] sm:$0xff]
    %v49 = vld [vmem:[#allocation6 + $0x8] sm:$0xff]
    %v50 = vld [vmem:[#allocation6 + $0x10] sm:$0xff]
    %v51 = vld [vmem:[#allocation6 + $0x18] sm:$0xff]
    %v52 = vld [vmem:[#allocation6 + $0x20] sm:$0xff]
    %v53 = vld [vmem:[#allocation6 + $0x28] sm:$0xff]
    %v54 = vld [vmem:[#allocation6 + $0x30] sm:$0xff]
    %v55 = vld [vmem:[#allocation6 + $0x38] sm:$0xff]
    %v56 = vld [vmem:[#allocation6 + $0x40] sm:$0xff]
    %v57 = vld [vmem:[#allocation6 + $0x48] sm:$0xff]
    %v58 = vld [vmem:[#allocation6 + $0x50] sm:$0xff]
    %v59 = vld [vmem:[#allocation6 + $0x58] sm:$0xff]
    %v60 = vld [vmem:[#allocation6 + $0x60] sm:$0xff]
    %v61 = vld [vmem:[#allocation6 + $0x68] sm:$0xff]
    %v62 = vld [vmem:[#allocation6 + $0x70] sm:$0xff]
    %v63 = vld [vmem:[#allocation6 + $0x78] sm:$0xff]
    %v64 = vld [vmem:[#allocation3] sm:$0xff]
    %v65 = vld [vmem:[%s3] sm:$0x1]
    %v67 = vlaneseq
    %v68 = vshrl.u32 %v67, 7
    %v69 = vsub.s32 0, %v68
    %v70 = vrot.slane %v65, %v69
    %72 = vmatprep.subr.mxu0 0.0
    %73 = vmatpush1.xpose.msra.mxu0 %v63
    %74 = vmatprep.subr.mxu0 0.0
    %75 = vmatpush1.xpose.msra.mxu0 %v62
    %76 = vmatprep.subr.mxu0 0.0
    %77 = vmatpush1.xpose.msra.mxu0 %v61
    %78 = vmatprep.subr.mxu0 0.0
    %79 = vmatpush1.xpose.msra.mxu0 %v60
    %80 = vmatprep.subr.mxu0 0.0
    %81 = vmatpush1.xpose.msra.mxu0 %v59
    %82 = vmatprep.subr.mxu0 0.0
    %83 = vmatpush1.xpose.msra.mxu0 %v58
    %84 = vmatprep.subr.mxu0 0.0
    %85 = vmatpush1.xpose.msra.mxu0 %v57
    %86 = vmatprep.subr.mxu0 0.0
    %87 = vmatpush1.xpose.msra.mxu0 %v56
    %88 = vmatprep.subr.mxu0 0.0
    %89 = vmatpush1.xpose.msra.mxu0 %v55
    %90 = vmatprep.subr.mxu0 0.0
    %91 = vmatpush1.xpose.msra.mxu0 %v54
    %92 = vmatprep.subr.mxu0 0.0
    %93 = vmatpush1.xpose.msra.mxu0 %v53
    %94 = vmatprep.subr.mxu0 0.0
    %95 = vmatpush1.xpose.msra.mxu0 %v52
    %96 = vmatprep.subr.mxu0 0.0
    %97 = vmatpush1.xpose.msra.mxu0 %v51
    %98 = vmatprep.subr.mxu0 0.0
    %99 = vmatpush1.xpose.msra.mxu0 %v50
    %100 = vmatprep.subr.mxu0 0.0
    %101 = vmatpush1.xpose.msra.mxu0 %v49
    %102 = vmatprep.subr.mxu0 0.0
    %103 = vmatpush1.xpose.msra.mxu0 %v48
    %104 = vmatprep.subr.mxu0 0.0
    %105 = vmatpush2.xpose.msra.mxu0 0.0
    %106 = vmatprep.subr.mxu0 0.0
    %107 = vmatpush2.xpose.msra.mxu0 0.0
    %108 = vmatprep.subr.mxu0 0.0
    %109 = vmatpush2.xpose.msra.mxu0 0.0
    %110 = vmatprep.subr.mxu0 0.0
    %111 = vmatpush2.xpose.msra.mxu0 0.0
    %112 = vmatprep.subr.mxu0 0.0
    %113 = vmatpush2.xpose.msra.mxu0 0.0
    %114 = vmatprep.subr.mxu0 0.0
    %115 = vmatpush2.xpose.msra.mxu0 0.0
    %116 = vmatprep.subr.mxu0 0.0
    %117 = vmatpush2.xpose.msra.mxu0 0.0
    %118 = vmatprep.subr.mxu0 0.0
    %119 = vmatpush2.xpose.msra.mxu0 0.0
    %120 = vmatprep.subr.mxu0 0.0
    %121 = vmatpush2.xpose.msra.mxu0 0.0
    %122 = vmatprep.subr.mxu0 0.0
    %123 = vmatpush2.xpose.msra.mxu0 0.0
    %124 = vmatprep.subr.mxu0 0.0
    %125 = vmatpush2.xpose.msra.mxu0 0.0
    %126 = vmatprep.subr.mxu0 0.0
    %127 = vmatpush2.xpose.msra.mxu0 0.0
    %128 = vmatprep.subr.mxu0 0.0
    %129 = vmatpush2.xpose.msra.mxu0 0.0
    %130 = vmatprep.subr.mxu0 0.0
    %131 = vmatpush2.xpose.msra.mxu0 0.0
    %132 = vmatprep.subr.mxu0 0.0
    %133 = vmatpush2.xpose.msra.mxu0 0.0
    %134 = vmatprep.subr.mxu0 0.0
    %135 = vmatpush2.xpose.msra.mxu0 0.0
    %136 = vmatprep.mubr.f32.mxu0 0.0
    %137 = vmatmul.mubr.f32.gmra.mxu0 %v64
    %v138 = vpop.f32.mrf.mxu0
    %v139 = vadd.f32 %v70, %v138
    %v140 = vpop.f32.mrf.mxu0
    %141 = vdwg.mxu0
    %142 = vst [vmem:[#allocation9] sm:$0xff] %v139
    %s143 = sld [smem:[#allocation2]]
    %v144 = vand.u32 2147483647, %v48
    %v145 = vand.u32 2147483647, %v49
    %v146 = vand.u32 2147483647, %v50
    %v147 = vand.u32 2147483647, %v51
    %v148 = vand.u32 2147483647, %v52
    %v149 = vand.u32 2147483647, %v53
    %v150 = vand.u32 2147483647, %v54
    %v151 = vand.u32 2147483647, %v55
    %v152 = vand.u32 2147483647, %v56
    %v153 = vand.u32 2147483647, %v57
    %v154 = vand.u32 2147483647, %v58
    %v155 = vand.u32 2147483647, %v59
    %v156 = vand.u32 2147483647, %v60
    %v157 = vand.u32 2147483647, %v61
    %v158 = vand.u32 2147483647, %v62
    %v159 = vand.u32 2147483647, %v63
    %v160 = vadd.f32 %v144, %v145
    %v161 = vadd.f32 %v160, %v146
    %v162 = vadd.f32 %v161, %v147
    %v163 = vadd.f32 %v162, %v148
    %v164 = vadd.f32 %v163, %v149
    %v165 = vadd.f32 %v164, %v150
    %v166 = vadd.f32 %v165, %v151
    %v167 = vadd.f32 %v166, %v152
    %v168 = vadd.f32 %v167, %v153
    %v169 = vadd.f32 %v168, %v154
    %v170 = vadd.f32 %v169, %v155
    %v171 = vadd.f32 %v170, %v156
    %v172 = vadd.f32 %v171, %v157
    %v173 = vadd.f32 %v172, %v158
    %v174 = vadd.f32 %v173, %v159
    %175 = vadd.xlane.f32.xlu0 %v174
    %v176 = vpop.xlane.xlu0 %175
    %v177 = vrot.slane %v176, 4
    %v178 = vadd.f32 %v176, %v177
    %v179 = vrot.slane %v178, 2
    %v180 = vadd.f32 %v178, %v179
    %v181 = vrot.slane %v180, 1
    %v182 = vadd.f32 %v180, %v181
    %s183 = vtos %v182
    %s184 = smul.f32 %s143, %s183
    %v185 = vstv %s184
    %v186 = vadd.f32 %v185, 0.0
    %187 = vst [vmem:[#allocation8] sm:$0xff] %v186
    // Predicated region
    $region26: #{tpu_custom_call.1} parent=1 // pred_check
      _
    $region27: #{tpu_custom_call.1} parent=1 // pred_check_branch
      %189 = sbr.rel (0) target = $region29
    $region28: #{tpu_custom_call.1} parent=1 // pred_region
      %s191 = ssub.s32 128, 128
      %192 = vsyncadd [#allocation5], %s191
      %s194 = sshll.u32 [#allocation8], 4
      %s195 = int_to_ptr.vmem [resolvable:$true] %s194
      %197 = dma.vmem_to_hbm [thread:$0]  %s195, 128, %s4, [#allocation5]
    $region29: #{tpu_custom_call.1} parent=1 // pred_fallthru
      _
    // Predicated region
    $region30: #{tpu_custom_call.1} parent=1 // pred_check
      _
    $region31: #{tpu_custom_call.1} parent=1 // pred_check_branch
      %199 = sbr.rel (0) target = $region33
    $region32: #{tpu_custom_call.1} parent=1 // pred_region
      %s201 = ssub.s32 128, 128
      %202 = vsyncadd [#allocation10], %s201
      %s204 = sshll.u32 [#allocation9], 4
      %s205 = int_to_ptr.vmem [resolvable:$true] %s204
      %207 = dma.vmem_to_hbm [thread:$0]  %s205, 128, %s5, [#allocation10]
    $region33: #{tpu_custom_call.1} parent=1 // pred_fallthru
      _
    // Predicated region
    $region34: #{tpu_custom_call.1} parent=1 // pred_check
      _
    $region35: #{tpu_custom_call.1} parent=1 // pred_check_branch
      %209 = sbr.rel (0) target = $region37
    $region36: #{tpu_custom_call.1} parent=1 // pred_region
      %210 = dma.done [#allocation5], 128
    $region37: #{tpu_custom_call.1} parent=1 // pred_fallthru
      _
    // Predicated region
    $region38: #{tpu_custom_call.1} parent=1 // pred_check
      _
    $region39: #{tpu_custom_call.1} parent=1 // pred_check_branch
      %212 = sbr.rel (0) target = $region41
    $region40: #{tpu_custom_call.1} parent=1 // pred_region
      %213 = dma.done [#allocation10], 128
    $region41: #{tpu_custom_call.1} parent=1 // pred_fallthru
      _
    %214 = vsyncpa [#allocation4], 1
    %215 = vsyncpa [#allocation7], 1
    %216 = vsyncpa [#allocation5], 1
    %217 = vsyncpa [#allocation10], 1

</llo_original>
